<compile_context>
chip_gen: v5e
topology: v5e:2x2
jax: 0.10.0
libtpu: 0.0.40
codegen_flags: <defaults>
</compile_context>

<pallas_src>
import functools

import jax
import jax.numpy as jnp
from jax.experimental import pallas as pl
from jax.experimental.pallas import tpu as pltpu


def _round_up(x, m):
    return ((x + m - 1) // m) * m


def _choose_tile_m(M):
    """512-1024 row tiles for large M; >=2 grid steps whenever M allows it."""
    if M >= 2048:
        return 1024
    if M >= 512:
        # Split into at least two steps, keep full-height MXU tiles (x256).
        return min(1024, _round_up(pl.cdiv(M, 2), 256))
    if M >= 32:
        # Small problems: still give the pipeline (and v7x's 2 TCs) two steps.
        return _round_up(pl.cdiv(M, 2), 16)
    return _round_up(max(M, 8), 16)


def _resident_spec(block_shape, index_map, single_buffer):
    """BlockSpec for a grid-invariant operand; single-buffer it if requested."""
    if single_buffer:
        try:
            return pl.BlockSpec(block_shape, index_map,
                                pipeline_mode=pl.Buffered(1))
        except (TypeError, AttributeError):
            pass  # API without pipeline_mode: fall back to default buffering.
    return pl.BlockSpec(block_shape, index_map)


def _patch_embed_kernel(x_ref, w_ref, b_ref, o_ref):
    # x_ref: [TILE_M, K_pad] patch tile; w_ref: [K_pad, N_pad] resident weight;
    # b_ref: [1, N_pad] resident bias; o_ref: [TILE_M, N_pad].
    acc = jnp.dot(x_ref[...], w_ref[...], preferred_element_type=jnp.float32)
    acc = acc + b_ref[...].astype(jnp.float32)  # broadcast bias over rows
    o_ref[...] = acc.astype(o_ref.dtype)


@functools.partial(jax.jit, static_argnames=("patch_size", "compute_dtype"))
def patch_embed(x, weight, bias, patch_size, compute_dtype=None):
    """x: [B, C, H, W]; weight: [embed_dim, C, P, P]; bias: [embed_dim].

    Returns [B, num_patches, embed_dim] == Conv2d(stride=P) -> flatten(2)
    -> transpose(1, 2), norm = Identity.
    """
    B, C, H, W = x.shape
    P = patch_size
    Gh, Gw = H // P, W // P
    num_patches = Gh * Gw
    embed_dim = weight.shape[0]
    K = C * P * P
    M = B * num_patches
    out_dtype = x.dtype

    if compute_dtype is None:
        is_half = x.dtype in (jnp.dtype(jnp.bfloat16), jnp.dtype(jnp.float16))
        compute_dtype = jnp.bfloat16 if is_half else x.dtype
    compute_dtype = jnp.dtype(compute_dtype)

    # Lane-dense padding for the contraction and output dims.
    K_pad = _round_up(K, 128)
    N_pad = _round_up(embed_dim, 128)
    TILE_M = _choose_tile_m(M)
    M_pad = _round_up(M, TILE_M)

    # Cast to the compute dtype *before* the patch-extraction transpose so the
    # materialized rearrangement moves half the bytes in bf16 mode.
    # Extract patches: [B,C,Gh,P,Gw,P] -> [B,Gh,Gw,C,P,P] -> [M, K].
    xc = x.astype(compute_dtype)
    patches = xc.reshape(B, C, Gh, P, Gw, P)
    patches = jnp.transpose(patches, (0, 2, 4, 1, 3, 5)).reshape(M, K)
    if M_pad != M or K_pad != K:
        patches = jnp.pad(patches, ((0, M_pad - M), (0, K_pad - K)))

    # Conv weight [embed_dim, C, P, P] -> matmul weight [K_pad, N_pad]; the
    # K ordering (c, ph, pw) matches the patch column ordering above.
    w_mat = weight.reshape(embed_dim, K).T.astype(compute_dtype)
    if K_pad != K or N_pad != embed_dim:
        w_mat = jnp.pad(w_mat, ((0, K_pad - K), (0, N_pad - embed_dim)))
    b_mat = bias.reshape(1, embed_dim)
    if N_pad != embed_dim:
        b_mat = jnp.pad(b_mat, ((0, 0), (0, N_pad - embed_dim)))

    # Per-operand itemsizes (activation/weight may differ from bias/output).
    x_item = compute_dtype.itemsize
    w_item = compute_dtype.itemsize
    b_item = jnp.dtype(b_mat.dtype).itemsize
    o_item = jnp.dtype(out_dtype).itemsize

    weight_bytes = K_pad * N_pad * w_item
    single_buffer_resident = weight_bytes >= (1 << 20)
    resident_bufs = 1 if single_buffer_resident else 2

    # Live VMEM: double-buffered activation/output tiles + resident weight/bias
    # (x2 unless single-buffered).
    est_vmem = (2 * TILE_M * K_pad * x_item
                + resident_bufs * weight_bytes
                + resident_bufs * N_pad * b_item
                + 2 * TILE_M * N_pad * o_item)

    flops = 2 * M_pad * K_pad * N_pad
    bytes_accessed = (M_pad * K_pad * x_item + weight_bytes
                      + N_pad * b_item + M_pad * N_pad * o_item)
    cost = pl.CostEstimate(flops=flops, transcendentals=0,
                           bytes_accessed=bytes_accessed)

    cp_kwargs = dict(dimension_semantics=("parallel",))
    # Default scoped VMEM is 16 MiB on v5e (32 MiB on v6e/v7x). Raise it when
    # the tiles need more, but never request more than 48 MiB so v7x (64 MiB
    # physical per TensorCore) keeps headroom for Mosaic internal scratch.
    if est_vmem > (12 << 20):
        cp_kwargs["vmem_limit_bytes"] = int(
            min(48 << 20, max(32 << 20, (est_vmem * 3) // 2)))
    compiler_params = pltpu.CompilerParams(**cp_kwargs)

    out = pl.pallas_call(
        _patch_embed_kernel,
        out_shape=jax.ShapeDtypeStruct((M_pad, N_pad), out_dtype),
        grid_spec=pltpu.PrefetchScalarGridSpec(
            num_scalar_prefetch=0,
            grid=(M_pad // TILE_M,),
            in_specs=[
                pl.BlockSpec((TILE_M, K_pad), lambda i: (i, 0)),  # patch tile
                _resident_spec((K_pad, N_pad), lambda i: (0, 0),
                               single_buffer_resident),           # weight
                _resident_spec((1, N_pad), lambda i: (0, 0),
                               single_buffer_resident),           # bias
            ],
            out_specs=pl.BlockSpec((TILE_M, N_pad), lambda i: (i, 0)),
        ),
        compiler_params=compiler_params,
        cost_estimate=cost,
    )(patches, w_mat, b_mat)

    # Slice off padding (fused under jit) and restore [B, L, D].
    return out[:M, :embed_dim].reshape(B, num_patches, embed_dim)


if __name__ == "__main__":
    # Shapes consistent with PatchEmbed(img_size=16, patch_size=4, in_chans=4,
    # embed_dim=32), batch=2.
    B, C, H, W = 2, 4, 16, 16
    P = 4
    embed_dim = 32

    key = jax.random.PRNGKey(0)
    kx, kw, kb = jax.random.split(key, 3)
    x = jax.random.normal(kx, (B, C, H, W), dtype=jnp.float32)
    weight = jax.random.normal(kw, (embed_dim, C, P, P), dtype=jnp.float32) * 0.02
    bias = jax.random.normal(kb, (embed_dim,), dtype=jnp.float32) * 0.02

    # Reference (same semantics as nn.Conv2d(stride=P) + flatten + transpose).
    ref = jax.lax.conv_general_dilated(
        x, weight, window_strides=(P, P), padding="VALID",
        dimension_numbers=("NCHW", "OIHW", "NCHW"),
    ) + bias.reshape(1, embed_dim, 1, 1)
    ref = ref.reshape(B, embed_dim, -1).transpose(0, 2, 1)

    # 1) Exact-semantics path (f32 compute, matches PyTorch Conv2d numerics).
    out = jax.block_until_ready(patch_embed(x, weight, bias, P))
    assert out.shape == (B, (H // P) * (W // P), embed_dim)
    assert jnp.allclose(out, ref, atol=1e-4, rtol=1e-4)

    # 2) bf16 compute path (MXU-peak path recommended by the perf review),
    #    f32 accumulation -> checked against the f32 reference loosely.
    out_bf16 = jax.block_until_ready(
        patch_embed(x, weight, bias, P, compute_dtype=jnp.bfloat16))
    assert out_bf16.shape == out.shape
    assert jnp.allclose(out_bf16, ref, atol=2e-2, rtol=5e-2)

    print("KERNEL_OK")
</pallas_src>

<mosaic_0001>
module attributes {stable_mosaic.version = 11 : i64} {
  func.func @_patch_embed_kernel(%arg0: i32, %arg1: memref<16x128xf32, #tpu.memory_space<vmem>>, %arg2: memref<128x128xf32, #tpu.memory_space<vmem>>, %arg3: memref<1x128xf32, #tpu.memory_space<vmem>>, %arg4: memref<16x128xf32, #tpu.memory_space<vmem>>) attributes {dimension_semantics = [#tpu.dimension_semantics<parallel>], iteration_bounds = array<i64: 2>, scalar_prefetch = 0 : i64, scratch_operands = 0 : i64, tpu.core_type = #tpu.core_type<tc>, window_params = [{transform_indices = @transform_0, window_bounds = array<i64: 16, 128>}, {pipeline_mode = #tpu.pipeline_mode<synchronous>, transform_indices = @transform_1, window_bounds = array<i64: 128, 128>}, {pipeline_mode = #tpu.pipeline_mode<synchronous>, transform_indices = @transform_2, window_bounds = array<i64: 1, 128>}, {transform_indices = @transform_3, window_bounds = array<i64: 16, 128>}]} {
    %c0 = arith.constant 0 : index
    %c0_0 = arith.constant 0 : index
    %0 = vector.load %arg1[%c0, %c0_0] : memref<16x128xf32, #tpu.memory_space<vmem>>, vector<16x128xf32>
    %c0_1 = arith.constant 0 : index
    %c0_2 = arith.constant 0 : index
    %1 = vector.load %arg2[%c0_1, %c0_2] : memref<128x128xf32, #tpu.memory_space<vmem>>, vector<128x128xf32>
    %cst = arith.constant dense<0.000000e+00> : vector<16x128xf32>
    %2 = tpu.matmul %0, %1, %cst {dimension_numbers = #tpu.dot_dimension_numbers<[1], [0], [0], [1], [0, 0, 1, 1], [], []>} : vector<16x128xf32>, vector<128x128xf32>, vector<16x128xf32> -> vector<16x128xf32>
    %c0_3 = arith.constant 0 : index
    %c0_4 = arith.constant 0 : index
    %3 = vector.load %arg3[%c0_3, %c0_4] : memref<1x128xf32, #tpu.memory_space<vmem>>, vector<1x128xf32>
    %4 = vector.broadcast %3 : vector<1x128xf32> to vector<16x128xf32>
    %5 = arith.addf %2, %4 : vector<16x128xf32>
    %c0_5 = arith.constant 0 : index
    %c0_6 = arith.constant 0 : index
    %6 = vector.load %arg4[%c0_5, %c0_6] : memref<16x128xf32, #tpu.memory_space<vmem>>, vector<16x128xf32>
    tpu.vector_store %arg4[%c0_5, %c0_6], %5 {strides = array<i32>} : memref<16x128xf32, #tpu.memory_space<vmem>>, vector<16x128xf32>,
    return
  }
  func.func @transform_0(%arg0: i32) -> (i32, i32) {
    %c0_i32 = arith.constant 0 : i32
    %c0_i32_0 = arith.constant 0 : i32
    return %arg0, %c0_i32 : i32, i32
  }
  func.func @transform_1(%arg0: i32) -> (i32, i32) {
    %c0_i32 = arith.constant 0 : i32
    %c0_i32_0 = arith.constant 0 : i32
    %c0_i32_1 = arith.constant 0 : i32
    return %c0_i32, %c0_i32_0 : i32, i32
  }
  func.func @transform_2(%arg0: i32) -> (i32, i32) {
    %c0_i32 = arith.constant 0 : i32
    %c0_i32_0 = arith.constant 0 : i32
    %c0_i32_1 = arith.constant 0 : i32
    return %c0_i32, %c0_i32_0 : i32, i32
  }
  func.func @transform_3(%arg0: i32) -> (i32, i32) {
    %c0_i32 = arith.constant 0 : i32
    %c0_i32_0 = arith.constant 0 : i32
    return %arg0, %c0_i32 : i32, i32
  }
}

</mosaic_0001>

<llo_original>
// kernel: patch_embed.1
$region0: #{patch_embed.1}
  #allocation0 [shape = 'u32[]', space=smem, size = 0x4, offset = 0x4, fixed_abs, tag = 'smem constant byte address 0x4 - core index']
  #allocation1 [shape = 'u32[72,128]{1,0:T(1,128)}', space=vmem, size = 0x9000, scoped, tag = 'internal scratch']
  %s0 = inlined_call_operand.vmem [shape: f32[32,128], index: 0, kind: input, shape index: {}]
  %s1 = inlined_call_operand.vmem [shape: f32[128,128], index: 1, kind: input, shape index: {}]
  %s2 = inlined_call_operand.vmem [shape: f32[1,128], index: 2, kind: input, shape index: {}]
  %s3 = inlined_call_operand.hbm [shape: f32[32,128], index: 3, kind: output, shape index: {}]
  %s4 = sld [smem:[#allocation0]]
  $region45: #{patch_embed.1} parent=0
    _
  %s6 = ssub.s32 1, %s4
  %s7 = scalar_select 0, %s6, %s4
  $region1: #{patch_embed.1} parent=0
    #allocation2 [shape = 'u8[16384]{0}', space=vmem, size = 0x4000, scoped, tag = 'output window, operand 0']
    #allocation3 [shape = 's32[2]{0}', space=sflag, size = 0x8, scoped, tag = 'scoped memory for patch_embed.1']
    %8 = vsyncpa [#allocation3], 0
    %s9 = scalar_lea.sflag [#allocation3], 1
    %10 = vsyncpa %s9, 0
    loop: start=0, step=1, limit=4
    $region2: #{patch_embed.1} parent=1 // loop_pre_header
      _
    $region3: #{patch_embed.1} parent=1 // loop_header
      %s12 = sphi 0, %s16
      %p13 = scmp.ge.s32.totalorder %s12, 4
      %s22 = sphi 0, %s24
      %s25 = sphi 0, %s22
      %s26 = sphi 0, %s25
      %s42 = sphi 0, %s26
      %s46 = sphi 0, %s46
      %s48 = sphi 0, %s46
      %s49 = sphi 0, %s48
      %s63 = sphi 0, %s49
      %s67 = sphi 0, %s67
      %s69 = sphi 0, %s67
      %s70 = sphi 0, %s69
      %s84 = sphi 0, %s70
      %s90 = sphi 0, %s92
      %s93 = sphi 0, %s90
      %s94 = sphi 0, %s93
      %s110 = sphi 0, %s94
    $region4: #{patch_embed.1} parent=1 // loop_header_branch
      %15 = sbr.rel (%p13) target = $region8
    $region5: #{patch_embed.1} parent=1 // loop_body
      %s17 = ssub.s32 %s12, 1
      %s18 = ssub.s32 %s12, 2
      %s19 = sadd.s32 %s12, 1
      %s20 = ssub.s32 %s12, %s19
      %p21 = scmp.eq.s32.totalorder %s20, 0
      %s23 = sadd.s32 %s22, 1
      %s24 = scalar_select %p21, %s22, %s23
      %p27 = pneg %p21
      %p28 = scmp.eq.s32.totalorder %s12, 1
      %p29 = por %p27, %p28
      %p30 = scmp.ne.s32.totalorder %s22, %s25
      %p31 = scmp.eq.s32.totalorder %s12, 0
      %p32 = por %p30, %p31
      %p33 = scmp.ne.s32.totalorder %s22, %s25
      %p34 = scmp.eq.s32.totalorder %s17, 1
      %p35 = por %p33, %p34
      %p36 = scmp.ne.s32.totalorder %s25, %s26
      %p37 = scmp.eq.s32.totalorder %s17, 0
      %p38 = por %p36, %p37
      %p39 = scmp.ne.s32.totalorder %s25, %s26
      %p40 = scmp.eq.s32.totalorder %s18, 1
      %p41 = por %p39, %p40
      %p43 = scmp.ne.s32.totalorder %s26, %s42
      %p44 = scmp.eq.s32.totalorder %s18, 0
      %p45 = por %p43, %p44
      %s47 = sadd.s32 %s46, 1
      %p50 = scmp.eq.s32.totalorder %s12, 1
      %p51 = scmp.ne.s32.totalorder %s46, %s48
      %p52 = scmp.eq.s32.totalorder %s12, 0
      %p53 = por %p51, %p52
      %p54 = scmp.ne.s32.totalorder %s46, %s48
      %p55 = scmp.eq.s32.totalorder %s17, 1
      %p56 = por %p54, %p55
      %p57 = scmp.ne.s32.totalorder %s48, %s49
      %p58 = scmp.eq.s32.totalorder %s17, 0
      %p59 = por %p57, %p58
      %p60 = scmp.ne.s32.totalorder %s48, %s49
      %p61 = scmp.eq.s32.totalorder %s18, 1
      %p62 = por %p60, %p61
      %p64 = scmp.ne.s32.totalorder %s49, %s63
      %p65 = scmp.eq.s32.totalorder %s18, 0
      %p66 = por %p64, %p65
      %s68 = sadd.s32 %s67, 1
      %p71 = scmp.eq.s32.totalorder %s12, 1
      %p72 = scmp.ne.s32.totalorder %s67, %s69
      %p73 = scmp.eq.s32.totalorder %s12, 0
      %p74 = por %p72, %p73
      %p75 = scmp.ne.s32.totalorder %s67, %s69
      %p76 = scmp.eq.s32.totalorder %s17, 1
      %p77 = por %p75, %p76
      %p78 = scmp.ne.s32.totalorder %s69, %s70
      %p79 = scmp.eq.s32.totalorder %s17, 0
      %p80 = por %p78, %p79
      %p81 = scmp.ne.s32.totalorder %s69, %s70
      %p82 = scmp.eq.s32.totalorder %s18, 1
      %p83 = por %p81, %p82
      %p85 = scmp.ne.s32.totalorder %s70, %s84
      %p86 = scmp.eq.s32.totalorder %s18, 0
      %p87 = por %p85, %p86
      %s88 = ssub.s32 %s12, %s19
      %p89 = scmp.eq.s32.totalorder %s88, 0
      %s91 = sadd.s32 %s90, 1
      %s92 = scalar_select %p89, %s90, %s91
      %p95 = pneg %p89
      %p96 = scmp.eq.s32.totalorder %s12, 1
      %p97 = por %p95, %p96
      %p98 = scmp.ne.s32.totalorder %s90, %s93
      %p99 = scmp.eq.s32.totalorder %s12, 0
      %p100 = por %p98, %p99
      %p101 = scmp.ne.s32.totalorder %s90, %s93
      %p102 = scmp.eq.s32.totalorder %s17, 1
      %p103 = por %p101, %p102
      %p104 = scmp.ne.s32.totalorder %s93, %s94
      %p105 = scmp.eq.s32.totalorder %s17, 0
      %p106 = por %p104, %p105
      %p107 = scmp.ne.s32.totalorder %s93, %s94
      %p108 = scmp.eq.s32.totalorder %s18, 1
      %p109 = por %p107, %p108
      %p111 = scmp.ne.s32.totalorder %s94, %s110
      %p112 = scmp.eq.s32.totalorder %s18, 0
      %p113 = por %p111, %p112
      %p114 = scmp.le.s32.totalorder 1, %s12
      %p115 = scmp.lt.s32.totalorder %s12, 3
      %p116 = pnand %p114, %p115
      %p117 = pneg %p116
      // Predicated region
      $region9: #{patch_embed.1} parent=5 // pred_check
        _
      $region10: #{patch_embed.1} parent=5 // pred_check_branch
        %119 = sbr.rel (%p116) target = $region12
      $region11: #{patch_embed.1} parent=5 // pred_region
        %s120 = ssub.s32 %s12, 1
        // Predicated region
        $region13: #{patch_embed.1} parent=11 // pred_check
          %p121 = pneg %p59
        $region14: #{patch_embed.1} parent=11 // pred_check_branch
          %123 = sbr.rel (%p121) target = $region16
        $region15: #{patch_embed.1} parent=11 // pred_region
          _
        $region16: #{patch_embed.1} parent=11 // pred_fallthru
          _
        // Predicated region
        $region17: #{patch_embed.1} parent=11 // pred_check
          %p124 = pneg %p80
        $region18: #{patch_embed.1} parent=11 // pred_check_branch
          %126 = sbr.rel (%p124) target = $region20
        $region19: #{patch_embed.1} parent=11 // pred_region
          _
        $region20: #{patch_embed.1} parent=11 // pred_fallthru
          _
      $region12: #{patch_embed.1} parent=5 // pred_fallthru
        _
      %p127 = scmp.lt.s32.totalorder %s12, 2
      // Predicated region
      $region21: #{patch_embed.1} parent=5 // pred_check
        %p128 = pneg %p127
      $region22: #{patch_embed.1} parent=5 // pred_check_branch
        %130 = sbr.rel (%p128) target = $region24
      $region23: #{patch_embed.1} parent=5 // pred_region
        // Predicated region
        $region25: #{patch_embed.1} parent=23 // pred_check
          %p131 = pneg %p32
        $region26: #{patch_embed.1} parent=23 // pred_check_branch
          %133 = sbr.rel (%p131) target = $region28
        $region27: #{patch_embed.1} parent=23 // pred_region
          %s134 = smul.u32 2, %s12
          %p135 = scmp.lt.s32.totalorder %s134, 3
          %s136 = scalar_select %p135, %s134, 3
          %s137 = smul.addr %s136, 8
          %s138 = scalar_lea.vmem %s0, %s137
          %s139 = smul.u32 2, %s12
        $region28: #{patch_embed.1} parent=23 // pred_fallthru
          _
      $region24: #{patch_embed.1} parent=5 // pred_fallthru
        _
      %p140 = scmp.le.s32.totalorder 1, %s12
      %p141 = scmp.lt.s32.totalorder %s12, 3
      %p142 = pnand %p140, %p141
      %p143 = pneg %p142
      // Predicated region
      $region29: #{patch_embed.1} parent=5 // pred_check
        _
      $region30: #{patch_embed.1} parent=5 // pred_check_branch
        %145 = sbr.rel (%p142) target = $region32
      $region31: #{patch_embed.1} parent=5 // pred_region
        %s146 = ssub.s32 %s12, 1
        %s147 = smul.u32 2, %s17
        %p148 = scmp.lt.s32.totalorder %s147, 3
        %s149 = scalar_select %p148, %s147, 3
        %s150 = smul.addr %s149, 8
        %s151 = scalar_lea.vmem %s0, %s150
        %p152 = pneg %p38
        %p153 = pneg %p35
        %p154 = pneg %p59
        %p155 = pneg %p56
        %p156 = pneg %p80
        %p157 = pneg %p77
        %p158 = pneg %p106
        %p159 = pneg %p103
        %s160 = sand.u32 %s93, 1
        %s161 = scalar_lea.sflag [#allocation3], %s160
        %s162 = sand.u32 %s93, 1
        %s163 = smul.addr %s162, 16
        %s164 = scalar_lea.vmem [#allocation2], %s163
        %s165 = smul.u32 2, %s17
        %p166 = scmp.lt.s32.totalorder %s165, 3
        %s167 = scalar_select %p166, %s165, 3
        %s168 = smul.addr %s167, 8
        %s169 = scalar_lea.vmem %s0, %s168
        %s170 = smul.u32 2, %s17
        %s171 = smul.u32 2, %s17
        %v172 = vld [vmem:[%s169] sm:$0xff]
        %v173 = vld [vmem:[%s169 + $0x8] sm:$0xff]
        %v174 = vld [vmem:[%s1] sm:$0xff]
        %v175 = vld [vmem:[%s1 + $0x8] sm:$0xff]
        %v176 = vld [vmem:[%s1 + $0x10] sm:$0xff]
        %v177 = vld [vmem:[%s1 + $0x18] sm:$0xff]
        %v178 = vld [vmem:[%s1 + $0x20] sm:$0xff]
        %v179 = vld [vmem:[%s1 + $0x28] sm:$0xff]
        %v180 = vld [vmem:[%s1 + $0x30] sm:$0xff]
        %v181 = vld [vmem:[%s1 + $0x38] sm:$0xff]
        %v182 = vld [vmem:[%s1 + $0x40] sm:$0xff]
        %v183 = vld [vmem:[%s1 + $0x48] sm:$0xff]
        %v184 = vld [vmem:[%s1 + $0x50] sm:$0xff]
        %v185 = vld [vmem:[%s1 + $0x58] sm:$0xff]
        %v186 = vld [vmem:[%s1 + $0x60] sm:$0xff]
        %v187 = vld [vmem:[%s1 + $0x68] sm:$0xff]
        %v188 = vld [vmem:[%s1 + $0x70] sm:$0xff]
        %v189 = vld [vmem:[%s1 + $0x78] sm:$0xff]
        %v190 = vld [vmem:[%s2] sm:$0x1]
        %v192 = vperm.slane %v190, 0
        %194 = vmatpush.msra.mxu0 %v189
        %195 = vmatpush.msra.mxu0 %v188
        %196 = vmatpush.msra.mxu0 %v187
        %197 = vmatpush.msra.mxu0 %v186
        %198 = vmatpush.msra.mxu0 %v185
        %199 = vmatpush.msra.mxu0 %v184
        %200 = vmatpush.msra.mxu0 %v183
        %201 = vmatpush.msra.mxu0 %v182
        %202 = vmatpush.msra.mxu0 %v181
        %203 = vmatpush.msra.mxu0 %v180
        %204 = vmatpush.msra.mxu0 %v179
        %205 = vmatpush.msra.mxu0 %v178
        %206 = vmatpush.msra.mxu0 %v177
        %207 = vmatpush.msra.mxu0 %v176
        %208 = vmatpush.msra.mxu0 %v175
        %209 = vmatpush.msra.mxu0 %v174
        %210 = vmatmul.f32.gmra.mxu0 %v172
        %v211 = vpop.f32.mrf.mxu0
        %v212 = vadd.f32 %v192, %v211
        %213 = vmatmul.f32.gmra.mxu0 %v173
        %v214 = vpop.f32.mrf.mxu0
        %v215 = vadd.f32 %v192, %v214
        %216 = vdwg.mxu0
        %217 = vst [vmem:[%s164] sm:$0xff] %v212
        %218 = vst [vmem:[%s164 + $0x8] sm:$0xff] %v215
        %s219 = sand.u32 %s93, 1
        %s220 = scalar_lea.sflag [#allocation3], %s219
        %s221 = sand.u32 %s93, 1
        %s222 = smul.addr %s221, 16
        %s223 = scalar_lea.vmem [#allocation2], %s222
        // Predicated region
        $region33: #{patch_embed.1} parent=31 // pred_check
          %p224 = pneg %p103
        $region34: #{patch_embed.1} parent=31 // pred_check_branch
          %226 = sbr.rel (%p224) target = $region36
        $region35: #{patch_embed.1} parent=31 // pred_region
          %s227 = smul.u32 2, %s17
          %229 = vsyncadd %s220, 0
          %s230 = smul.addr %s227, 8
          %s231 = scalar_lea.hbm %s3, %s230
          %s232 = sshll.u32 %s223, 4
          %s233 = int_to_ptr.vmem [resolvable:$true] %s232
          %s234 = sshll.u32 %s231, 4
          %s235 = int_to_ptr.hbm [resolvable:$true] %s234
          %240 = dma.vmem_to_hbm [thread:$0]  %s233, 256, %s235, %s220, 128, 128, 8
        $region36: #{patch_embed.1} parent=31 // pred_fallthru
          _
      $region32: #{patch_embed.1} parent=5 // pred_fallthru
        _
      %p241 = scmp.le.s32.totalorder 2, %s12
      // Predicated region
      $region37: #{patch_embed.1} parent=5 // pred_check
        %p242 = pneg %p241
      $region38: #{patch_embed.1} parent=5 // pred_check_branch
        %244 = sbr.rel (%p242) target = $region40
      $region39: #{patch_embed.1} parent=5 // pred_region
        %s245 = ssub.s32 %s12, 2
        // Predicated region
        $region41: #{patch_embed.1} parent=39 // pred_check
          %p246 = pneg %p109
        $region42: #{patch_embed.1} parent=39 // pred_check_branch
          %248 = sbr.rel (%p246) target = $region44
        $region43: #{patch_embed.1} parent=39 // pred_region
          %s249 = sand.u32 %s94, 1
          %s250 = scalar_lea.sflag [#allocation3], %s249
          %s251 = sand.u32 %s94, 1
          %s252 = smul.addr %s251, 16
          %s253 = scalar_lea.vmem [#allocation2], %s252
          %255 = dma.done %s250, 256
        $region44: #{patch_embed.1} parent=39 // pred_fallthru
          _
      $region40: #{patch_embed.1} parent=5 // pred_fallthru
        _
    $region6: #{patch_embed.1} parent=1 // loop_footer
      %s16 = sadd.s32 1, %s12
    $region7: #{patch_embed.1} parent=1 // loop_footer_branch
      %11 = sbr.rel target = $region3
    $region8: #{patch_embed.1} parent=1 // loop_exit
      _
    %256 = vsyncpa [#allocation3], 1
    %s257 = scalar_lea.sflag [#allocation3], 1
    %258 = vsyncpa %s257, 1

</llo_original>
